<compile_context>
chip_gen: v7x
topology: tpu7x:2x2x1
jax: 0.10.0
libtpu: 0.0.40
codegen_flags: <defaults>
</compile_context>

<pallas_src>
import functools

import jax
import jax.numpy as jnp
from jax.experimental import pallas as pl
from jax.experimental.pallas import tpu as pltpu

KSIZE = 7
PAD = KSIZE // 2


def _shift_flat(x, s):
    """Zero-fill shift along the last axis: y[..., p] = x[..., p + s], else 0."""
    n = x.shape[-1]
    if s == 0:
        return x
    if abs(s) >= n:
        return jnp.zeros_like(x)
    fill = jnp.zeros(x.shape[:-1] + (abs(s),), x.dtype)
    if s > 0:
        return jnp.concatenate([x[..., s:], fill], axis=-1)
    return jnp.concatenate([fill, x[..., :s]], axis=-1)


def _spatial_attention_kernel(x_ref, w_ref, mask_ref,
                              bn1_a_ref, bn1_b_ref, bn2_a_ref, bn2_b_ref,
                              out_ref, *, W):
    """x_ref block: (1, C, HW).  w_ref: (7, 14, 1) f32 VMEM (ky, kx*2+c, 1).
    mask_ref: (14, HW) f32 column-validity mask.  bn*: SMEM scalars."""
    x = x_ref[0]                                                  # (C, HW)

    # ---- channel-wise mean / max (no full f32 copy of x) ----
    avg = jnp.mean(x, axis=0, keepdims=True, dtype=jnp.float32)   # (1, HW) f32
    mx = jnp.max(x, axis=0, keepdims=True).astype(jnp.float32)    # (1, HW) f32

    # ---- BN1 folded affine (channel 0 = avg, channel 1 = max) ----
    f0 = avg * bn1_a_ref[0] + bn1_b_ref[0]
    f1 = mx * bn1_a_ref[1] + bn1_b_ref[1]
    feat = jnp.concatenate([f0, f1], axis=0)                      # (2, HW) f32

    # ---- 7x7 "same" conv, sublane-packed ----
    # Column taps: 7 kx-shifted copies of both channels stacked into a single
    # (14, HW) block (row r = kx*2 + c); row-crossing leakage of the flat
    # column shift is killed by the packed precomputed column-validity mask.
    cols = [_shift_flat(feat, kx - PAD) for kx in range(KSIZE)]
    taps = jnp.concatenate(cols, axis=0) * mask_ref[...]          # (14, HW)

    # Row taps: per ky, one dense (14,HW)*(14,1) multiply + sublane reduce,
    # then a zero-fill row shift (zero fill == Conv2d zero padding, so no row
    # mask is needed).  Single (1, HW) accumulator.
    conv = jnp.zeros((1, taps.shape[-1]), jnp.float32)
    for ky in range(KSIZE):
        h = jnp.sum(taps * w_ref[ky], axis=0, keepdims=True)      # (1, HW)
        conv = conv + _shift_flat(h, (ky - PAD) * W)

    # ---- BN2 folded affine + sigmoid (EUP) ----
    att = jax.nn.sigmoid(conv * bn2_a_ref[0] + bn2_b_ref[0])      # (1, HW) f32

    # ---- modulate input (broadcast over channels); lane-dense store ----
    out_ref[0] = (att.astype(x.dtype) * x).astype(out_ref.dtype)


def spatial_attention(x, conv_w, bn1_a, bn1_b, bn2_a, bn2_b):
    """x: (B, C, H, W). conv_w: (1, 2, 7, 7). bn*: folded affine params."""
    B, C, H, W = x.shape
    HW = H * W

    # Lane-dense layout: flatten spatial dims (contiguous => free reshape).
    x2 = x.reshape(B, C, HW)

    # Conv weights packed to match the (14, HW) tap stack: [ky, kx*2 + c, 1].
    w_cols = jnp.transpose(conv_w.astype(jnp.float32)[0], (1, 2, 0))  # (ky,kx,c)
    w_cols = w_cols.reshape(KSIZE, 2 * KSIZE, 1)

    # Packed column-validity mask (host-side, so the kernel needs no iota or
    # integer div/mod); one row per (kx, c) tap row.
    col = jnp.arange(HW, dtype=jnp.int32) % W
    mrows = []
    for kx in range(KSIZE):
        ox = kx - PAD
        ok = ((col + ox >= 0) & (col + ox < W)).astype(jnp.float32)
        mrows.append(jnp.stack([ok, ok], axis=0))        # same mask for c=0,1
    colmask = jnp.concatenate(mrows, axis=0)              # (14, HW)

    # VMEM budget: double-buffered in/out blocks + f32 conv temporaries,
    # clamped below v7x's 64 MiB physical VMEM and above v5e's 16 MiB default.
    itemsize = jnp.dtype(x.dtype).itemsize
    est = 4 * C * HW * itemsize + 48 * HW * 4 + (2 << 20)
    vmem_limit = int(min(max(est, 32 << 20), 56 << 20))

    kernel = pl.pallas_call(
        functools.partial(_spatial_attention_kernel, W=W),
        out_shape=jax.ShapeDtypeStruct((B, C, HW), x.dtype),
        grid=(B,),
        in_specs=[
            pl.BlockSpec((1, C, HW), lambda b: (b, 0, 0)),             # x
            pl.BlockSpec((KSIZE, 2 * KSIZE, 1), lambda b: (0, 0, 0)),  # conv w
            pl.BlockSpec((2 * KSIZE, HW), lambda b: (0, 0)),           # col mask
            pl.BlockSpec(memory_space=pltpu.SMEM),                     # bn1 scale
            pl.BlockSpec(memory_space=pltpu.SMEM),                     # bn1 shift
            pl.BlockSpec(memory_space=pltpu.SMEM),                     # bn2 scale
            pl.BlockSpec(memory_space=pltpu.SMEM),                     # bn2 shift
        ],
        out_specs=pl.BlockSpec((1, C, HW), lambda b: (b, 0, 0)),
        compiler_params=pltpu.CompilerParams(
            dimension_semantics=("parallel",),
            vmem_limit_bytes=vmem_limit),
    )
    out2 = kernel(x2, w_cols, colmask,
                  bn1_a.astype(jnp.float32), bn1_b.astype(jnp.float32),
                  bn2_a.astype(jnp.float32), bn2_b.astype(jnp.float32))
    return out2.reshape(B, C, H, W)


def _fold_bn(gamma, beta, mean, var, eps=1e-5):
    scale = gamma / jnp.sqrt(var + eps)
    shift = beta - mean * scale
    return scale.astype(jnp.float32), shift.astype(jnp.float32)


def _reference(x, conv_w, bn1_a, bn1_b, bn2_a, bn2_b):
    avg = jnp.mean(x, axis=1, keepdims=True)
    mx = jnp.max(x, axis=1, keepdims=True)
    feat = jnp.concatenate([avg, mx], axis=1)
    feat = feat * bn1_a[None, :, None, None] + bn1_b[None, :, None, None]
    conv = jax.lax.conv_general_dilated(
        feat, conv_w, window_strides=(1, 1), padding=((PAD, PAD), (PAD, PAD)),
        dimension_numbers=("NCHW", "OIHW", "NCHW"))
    conv = conv * bn2_a[None, :, None, None] + bn2_b[None, :, None, None]
    return jax.nn.sigmoid(conv) * x


if __name__ == "__main__":
    key = jax.random.PRNGKey(0)
    kxa, kw, kg1, kb1, kg2, kb2, kxb = jax.random.split(key, 7)

    # Deterministic synthetic parameters (shapes per module __init__).
    conv_w = jax.random.normal(kw, (1, 2, KSIZE, KSIZE), jnp.float32) * 0.1
    bn1_gamma = 1.0 + 0.1 * jax.random.normal(kg1, (2,), jnp.float32)
    bn1_beta = 0.1 * jax.random.normal(kb1, (2,), jnp.float32)
    bn1_mean = jnp.zeros((2,), jnp.float32)
    bn1_var = jnp.ones((2,), jnp.float32)
    bn2_gamma = 1.0 + 0.1 * jax.random.normal(kg2, (1,), jnp.float32)
    bn2_beta = 0.1 * jax.random.normal(kb2, (1,), jnp.float32)
    bn2_mean = jnp.zeros((1,), jnp.float32)
    bn2_var = jnp.ones((1,), jnp.float32)

    bn1_a, bn1_b = _fold_bn(bn1_gamma, bn1_beta, bn1_mean, bn1_var)
    bn2_a, bn2_b = _fold_bn(bn2_gamma, bn2_beta, bn2_mean, bn2_var)

    # ---- test 1: f32, square spatial ----
    B, C, H, W = 2, 4, 16, 16
    x = jax.random.normal(kxa, (B, C, H, W), dtype=jnp.float32)
    out = jax.block_until_ready(
        spatial_attention(x, conv_w, bn1_a, bn1_b, bn2_a, bn2_b))
    ref = _reference(x, conv_w, bn1_a, bn1_b, bn2_a, bn2_b)
    assert out.shape == (B, C, H, W)
    assert jnp.allclose(out, ref, atol=1e-5, rtol=1e-5), "f32 mismatch vs reference"

    # ---- test 2: bf16, non-square spatial (H != W, W not a power of two) ----
    Bb, Cb, Hb, Wb = 1, 5, 8, 24
    xb = jax.random.normal(kxb, (Bb, Cb, Hb, Wb), jnp.float32).astype(jnp.bfloat16)
    outb = jax.block_until_ready(
        spatial_attention(xb, conv_w, bn1_a, bn1_b, bn2_a, bn2_b))
    refb = _reference(xb.astype(jnp.float32), conv_w, bn1_a, bn1_b, bn2_a, bn2_b)
    assert outb.dtype == jnp.bfloat16 and outb.shape == (Bb, Cb, Hb, Wb)
    assert jnp.allclose(outb.astype(jnp.float32), refb, atol=5e-2, rtol=5e-2), \
        "bf16 mismatch vs reference"

    print("KERNEL_OK")
</pallas_src>

<mosaic_0001>
module attributes {stable_mosaic.version = 11 : i64} {
  func.func @_spatial_attention_kernel(%arg0: i32, %arg1: memref<1x4x256xf32, #tpu.memory_space<vmem>>, %arg2: memref<7x14x1xf32, #tpu.memory_space<vmem>>, %arg3: memref<14x256xf32, #tpu.memory_space<vmem>>, %arg4: memref<2xf32, #tpu.memory_space<smem>>, %arg5: memref<2xf32, #tpu.memory_space<smem>>, %arg6: memref<1xf32, #tpu.memory_space<smem>>, %arg7: memref<1xf32, #tpu.memory_space<smem>>, %arg8: memref<1x4x256xf32, #tpu.memory_space<vmem>>) attributes {dimension_semantics = [#tpu.dimension_semantics<parallel>], iteration_bounds = array<i64: 2>, scalar_prefetch = 0 : i64, scratch_operands = 0 : i64, tpu.core_type = #tpu.core_type<tc>, window_params = [{transform_indices = @transform_0, window_bounds = array<i64: 1, 4, 256>}, {pipeline_mode = #tpu.pipeline_mode<synchronous>, transform_indices = @transform_1, window_bounds = array<i64: 7, 14, 1>}, {pipeline_mode = #tpu.pipeline_mode<synchronous>, transform_indices = @transform_2, window_bounds = array<i64: 14, 256>}, {transform_indices = @transform_3, window_bounds = array<i64: 2>}, {transform_indices = @transform_4, window_bounds = array<i64: 2>}, {transform_indices = @transform_5, window_bounds = array<i64: 1>}, {transform_indices = @transform_6, window_bounds = array<i64: 1>}, {transform_indices = @transform_7, window_bounds = array<i64: 1, 4, 256>}]} {
    %c0 = arith.constant 0 : index
    %c0_0 = arith.constant 0 : index
    %c0_1 = arith.constant 0 : index
    %0 = vector.load %arg1[%c0, %c0_0, %c0_1] : memref<1x4x256xf32, #tpu.memory_space<vmem>>, vector<1x4x256xf32>
    %1 = vector.shape_cast %0 : vector<1x4x256xf32> to vector<4x256xf32>
    %cst = arith.constant dense<0.000000e+00> : vector<256xf32>
    %2 = vector.multi_reduction <add>, %1, %cst [0] : vector<4x256xf32> to vector<256xf32>
    %3 = vector.shape_cast %2 : vector<256xf32> to vector<1x256xf32>
    %cst_2 = arith.constant 4.000000e+00 : f32
    %4 = vector.broadcast %cst_2 : f32 to vector<1x256xf32>
    %5 = arith.divf %3, %4 : vector<1x256xf32>
    %cst_3 = arith.constant dense<0xFF800000> : vector<256xf32>
    %6 = vector.multi_reduction <maximumf>, %1, %cst_3 [0] : vector<4x256xf32> to vector<256xf32>
    %7 = vector.shape_cast %6 : vector<256xf32> to vector<1x256xf32>
    %c0_4 = arith.constant 0 : index
    %8 = memref.load %arg4[%c0_4] : memref<2xf32, #tpu.memory_space<smem>>
    %9 = vector.broadcast %8 : f32 to vector<1x256xf32>
    %10 = arith.mulf %5, %9 : vector<1x256xf32>
    %c0_5 = arith.constant 0 : index
    %11 = memref.load %arg5[%c0_5] : memref<2xf32, #tpu.memory_space<smem>>
    %12 = vector.broadcast %11 : f32 to vector<1x256xf32>
    %13 = arith.addf %10, %12 : vector<1x256xf32>
    %c1 = arith.constant 1 : index
    %14 = memref.load %arg4[%c1] : memref<2xf32, #tpu.memory_space<smem>>
    %15 = vector.broadcast %14 : f32 to vector<1x256xf32>
    %16 = arith.mulf %7, %15 : vector<1x256xf32>
    %c1_6 = arith.constant 1 : index
    %17 = memref.load %arg5[%c1_6] : memref<2xf32, #tpu.memory_space<smem>>
    %18 = vector.broadcast %17 : f32 to vector<1x256xf32>
    %19 = arith.addf %16, %18 : vector<1x256xf32>
    %20 = tpu.concatenate %13, %19 in 0 : vector<1x256xf32>, vector<1x256xf32> -> vector<2x256xf32>
    %cst_7 = arith.constant 0.000000e+00 : f32
    %21 = vector.broadcast %cst_7 : f32 to vector<2x3xf32>
    %22 = vector.extract_strided_slice %20 {offsets = [0, 0], sizes = [2, 253], strides = [1, 1]} : vector<2x256xf32> to vector<2x253xf32>
    %23 = tpu.concatenate %21, %22 in 1 : vector<2x3xf32>, vector<2x253xf32> -> vector<2x256xf32>
    %cst_8 = arith.constant 0.000000e+00 : f32
    %24 = vector.broadcast %cst_8 : f32 to vector<2x2xf32>
    %25 = vector.extract_strided_slice %20 {offsets = [0, 0], sizes = [2, 254], strides = [1, 1]} : vector<2x256xf32> to vector<2x254xf32>
    %26 = tpu.concatenate %24, %25 in 1 : vector<2x2xf32>, vector<2x254xf32> -> vector<2x256xf32>
    %cst_9 = arith.constant 0.000000e+00 : f32
    %27 = vector.broadcast %cst_9 : f32 to vector<2x1xf32>
    %28 = vector.extract_strided_slice %20 {offsets = [0, 0], sizes = [2, 255], strides = [1, 1]} : vector<2x256xf32> to vector<2x255xf32>
    %29 = tpu.concatenate %27, %28 in 1 : vector<2x1xf32>, vector<2x255xf32> -> vector<2x256xf32>
    %cst_10 = arith.constant 0.000000e+00 : f32
    %30 = vector.broadcast %cst_10 : f32 to vector<2x1xf32>
    %31 = vector.extract_strided_slice %20 {offsets = [0, 1], sizes = [2, 255], strides = [1, 1]} : vector<2x256xf32> to vector<2x255xf32>
    %32 = tpu.concatenate %31, %30 in 1 : vector<2x255xf32>, vector<2x1xf32> -> vector<2x256xf32>
    %cst_11 = arith.constant 0.000000e+00 : f32
    %33 = vector.broadcast %cst_11 : f32 to vector<2x2xf32>
    %34 = vector.extract_strided_slice %20 {offsets = [0, 2], sizes = [2, 254], strides = [1, 1]} : vector<2x256xf32> to vector<2x254xf32>
    %35 = tpu.concatenate %34, %33 in 1 : vector<2x254xf32>, vector<2x2xf32> -> vector<2x256xf32>
    %cst_12 = arith.constant 0.000000e+00 : f32
    %36 = vector.broadcast %cst_12 : f32 to vector<2x3xf32>
    %37 = vector.extract_strided_slice %20 {offsets = [0, 3], sizes = [2, 253], strides = [1, 1]} : vector<2x256xf32> to vector<2x253xf32>
    %38 = tpu.concatenate %37, %36 in 1 : vector<2x253xf32>, vector<2x3xf32> -> vector<2x256xf32>
    %39 = tpu.concatenate %23, %26, %29, %20, %32, %35, %38 in 0 : vector<2x256xf32>, vector<2x256xf32>, vector<2x256xf32>, vector<2x256xf32>, vector<2x256xf32>, vector<2x256xf32>, vector<2x256xf32> -> vector<14x256xf32>
    %c0_13 = arith.constant 0 : index
    %c0_14 = arith.constant 0 : index
    %40 = vector.load %arg3[%c0_13, %c0_14] : memref<14x256xf32, #tpu.memory_space<vmem>>, vector<14x256xf32>
    %41 = arith.mulf %39, %40 : vector<14x256xf32>
    %cst_15 = arith.constant 0.000000e+00 : f32
    %42 = vector.broadcast %cst_15 : f32 to vector<1x256xf32>
    %c0_16 = arith.constant 0 : index
    %c0_17 = arith.constant 0 : index
    %c0_18 = arith.constant 0 : index
    %43 = vector.load %arg2[%c0_16, %c0_17, %c0_18] : memref<7x14x1xf32, #tpu.memory_space<vmem>>, vector<1x14x1xf32>
    %44 = vector.shape_cast %43 : vector<1x14x1xf32> to vector<14x1xf32>
    %45 = vector.broadcast %44 : vector<14x1xf32> to vector<14x256xf32>
    %46 = arith.mulf %41, %45 : vector<14x256xf32>
    %cst_19 = arith.constant dense<0.000000e+00> : vector<256xf32>
    %47 = vector.multi_reduction <add>, %46, %cst_19 [0] : vector<14x256xf32> to vector<256xf32>
    %48 = vector.shape_cast %47 : vector<256xf32> to vector<1x256xf32>
    %cst_20 = arith.constant 0.000000e+00 : f32
    %49 = vector.broadcast %cst_20 : f32 to vector<1x48xf32>
    %50 = vector.extract_strided_slice %48 {offsets = [0, 0], sizes = [1, 208], strides = [1, 1]} : vector<1x256xf32> to vector<1x208xf32>
    %51 = tpu.concatenate %49, %50 in 1 : vector<1x48xf32>, vector<1x208xf32> -> vector<1x256xf32>
    %52 = arith.addf %42, %51 : vector<1x256xf32>
    %c1_21 = arith.constant 1 : index
    %c0_22 = arith.constant 0 : index
    %c0_23 = arith.constant 0 : index
    %53 = vector.load %arg2[%c1_21, %c0_22, %c0_23] : memref<7x14x1xf32, #tpu.memory_space<vmem>>, vector<1x14x1xf32>
    %54 = vector.shape_cast %53 : vector<1x14x1xf32> to vector<14x1xf32>
    %55 = vector.broadcast %54 : vector<14x1xf32> to vector<14x256xf32>
    %56 = arith.mulf %41, %55 : vector<14x256xf32>
    %cst_24 = arith.constant dense<0.000000e+00> : vector<256xf32>
    %57 = vector.multi_reduction <add>, %56, %cst_24 [0] : vector<14x256xf32> to vector<256xf32>
    %58 = vector.shape_cast %57 : vector<256xf32> to vector<1x256xf32>
    %cst_25 = arith.constant 0.000000e+00 : f32
    %59 = vector.broadcast %cst_25 : f32 to vector<1x32xf32>
    %60 = vector.extract_strided_slice %58 {offsets = [0, 0], sizes = [1, 224], strides = [1, 1]} : vector<1x256xf32> to vector<1x224xf32>
    %61 = tpu.concatenate %59, %60 in 1 : vector<1x32xf32>, vector<1x224xf32> -> vector<1x256xf32>
    %62 = arith.addf %52, %61 : vector<1x256xf32>
    %c2 = arith.constant 2 : index
    %c0_26 = arith.constant 0 : index
    %c0_27 = arith.constant 0 : index
    %63 = vector.load %arg2[%c2, %c0_26, %c0_27] : memref<7x14x1xf32, #tpu.memory_space<vmem>>, vector<1x14x1xf32>
    %64 = vector.shape_cast %63 : vector<1x14x1xf32> to vector<14x1xf32>
    %65 = vector.broadcast %64 : vector<14x1xf32> to vector<14x256xf32>
    %66 = arith.mulf %41, %65 : vector<14x256xf32>
    %cst_28 = arith.constant dense<0.000000e+00> : vector<256xf32>
    %67 = vector.multi_reduction <add>, %66, %cst_28 [0] : vector<14x256xf32> to vector<256xf32>
    %68 = vector.shape_cast %67 : vector<256xf32> to vector<1x256xf32>
    %cst_29 = arith.constant 0.000000e+00 : f32
    %69 = vector.broadcast %cst_29 : f32 to vector<1x16xf32>
    %70 = vector.extract_strided_slice %68 {offsets = [0, 0], sizes = [1, 240], strides = [1, 1]} : vector<1x256xf32> to vector<1x240xf32>
    %71 = tpu.concatenate %69, %70 in 1 : vector<1x16xf32>, vector<1x240xf32> -> vector<1x256xf32>
    %72 = arith.addf %62, %71 : vector<1x256xf32>
    %c3 = arith.constant 3 : index
    %c0_30 = arith.constant 0 : index
    %c0_31 = arith.constant 0 : index
    %73 = vector.load %arg2[%c3, %c0_30, %c0_31] : memref<7x14x1xf32, #tpu.memory_space<vmem>>, vector<1x14x1xf32>
    %74 = vector.shape_cast %73 : vector<1x14x1xf32> to vector<14x1xf32>
    %75 = vector.broadcast %74 : vector<14x1xf32> to vector<14x256xf32>
    %76 = arith.mulf %41, %75 : vector<14x256xf32>
    %cst_32 = arith.constant dense<0.000000e+00> : vector<256xf32>
    %77 = vector.multi_reduction <add>, %76, %cst_32 [0] : vector<14x256xf32> to vector<256xf32>
    %78 = vector.shape_cast %77 : vector<256xf32> to vector<1x256xf32>
    %79 = arith.addf %72, %78 : vector<1x256xf32>
    %c4 = arith.constant 4 : index
    %c0_33 = arith.constant 0 : index
    %c0_34 = arith.constant 0 : index
    %80 = vector.load %arg2[%c4, %c0_33, %c0_34] : memref<7x14x1xf32, #tpu.memory_space<vmem>>, vector<1x14x1xf32>
    %81 = vector.shape_cast %80 : vector<1x14x1xf32> to vector<14x1xf32>
    %82 = vector.broadcast %81 : vector<14x1xf32> to vector<14x256xf32>
    %83 = arith.mulf %41, %82 : vector<14x256xf32>
    %cst_35 = arith.constant dense<0.000000e+00> : vector<256xf32>
    %84 = vector.multi_reduction <add>, %83, %cst_35 [0] : vector<14x256xf32> to vector<256xf32>
    %85 = vector.shape_cast %84 : vector<256xf32> to vector<1x256xf32>
    %cst_36 = arith.constant 0.000000e+00 : f32
    %86 = vector.broadcast %cst_36 : f32 to vector<1x16xf32>
    %87 = vector.extract_strided_slice %85 {offsets = [0, 16], sizes = [1, 240], strides = [1, 1]} : vector<1x256xf32> to vector<1x240xf32>
    %88 = tpu.concatenate %87, %86 in 1 : vector<1x240xf32>, vector<1x16xf32> -> vector<1x256xf32>
    %89 = arith.addf %79, %88 : vector<1x256xf32>
    %c5 = arith.constant 5 : index
    %c0_37 = arith.constant 0 : index
    %c0_38 = arith.constant 0 : index
    %90 = vector.load %arg2[%c5, %c0_37, %c0_38] : memref<7x14x1xf32, #tpu.memory_space<vmem>>, vector<1x14x1xf32>
    %91 = vector.shape_cast %90 : vector<1x14x1xf32> to vector<14x1xf32>
    %92 = vector.broadcast %91 : vector<14x1xf32> to vector<14x256xf32>
    %93 = arith.mulf %41, %92 : vector<14x256xf32>
    %cst_39 = arith.constant dense<0.000000e+00> : vector<256xf32>
    %94 = vector.multi_reduction <add>, %93, %cst_39 [0] : vector<14x256xf32> to vector<256xf32>
    %95 = vector.shape_cast %94 : vector<256xf32> to vector<1x256xf32>
    %cst_40 = arith.constant 0.000000e+00 : f32
    %96 = vector.broadcast %cst_40 : f32 to vector<1x32xf32>
    %97 = vector.extract_strided_slice %95 {offsets = [0, 32], sizes = [1, 224], strides = [1, 1]} : vector<1x256xf32> to vector<1x224xf32>
    %98 = tpu.concatenate %97, %96 in 1 : vector<1x224xf32>, vector<1x32xf32> -> vector<1x256xf32>
    %99 = arith.addf %89, %98 : vector<1x256xf32>
    %c6 = arith.constant 6 : index
    %c0_41 = arith.constant 0 : index
    %c0_42 = arith.constant 0 : index
    %100 = vector.load %arg2[%c6, %c0_41, %c0_42] : memref<7x14x1xf32, #tpu.memory_space<vmem>>, vector<1x14x1xf32>
    %101 = vector.shape_cast %100 : vector<1x14x1xf32> to vector<14x1xf32>
    %102 = vector.broadcast %101 : vector<14x1xf32> to vector<14x256xf32>
    %103 = arith.mulf %41, %102 : vector<14x256xf32>
    %cst_43 = arith.constant dense<0.000000e+00> : vector<256xf32>
    %104 = vector.multi_reduction <add>, %103, %cst_43 [0] : vector<14x256xf32> to vector<256xf32>
    %105 = vector.shape_cast %104 : vector<256xf32> to vector<1x256xf32>
    %cst_44 = arith.constant 0.000000e+00 : f32
    %106 = vector.broadcast %cst_44 : f32 to vector<1x48xf32>
    %107 = vector.extract_strided_slice %105 {offsets = [0, 48], sizes = [1, 208], strides = [1, 1]} : vector<1x256xf32> to vector<1x208xf32>
    %108 = tpu.concatenate %107, %106 in 1 : vector<1x208xf32>, vector<1x48xf32> -> vector<1x256xf32>
    %109 = arith.addf %99, %108 : vector<1x256xf32>
    %c0_45 = arith.constant 0 : index
    %110 = memref.load %arg6[%c0_45] : memref<1xf32, #tpu.memory_space<smem>>
    %111 = vector.broadcast %110 : f32 to vector<1x256xf32>
    %112 = arith.mulf %109, %111 : vector<1x256xf32>
    %c0_46 = arith.constant 0 : index
    %113 = memref.load %arg7[%c0_46] : memref<1xf32, #tpu.memory_space<smem>>
    %114 = vector.broadcast %113 : f32 to vector<1x256xf32>
    %115 = arith.addf %112, %114 : vector<1x256xf32>
    %116 = arith.negf %115 : vector<1x256xf32>
    %117 = math.exp %116 : vector<1x256xf32>
    %cst_47 = arith.constant 1.000000e+00 : f32
    %118 = vector.broadcast %cst_47 : f32 to vector<1x256xf32>
    %119 = arith.addf %118, %117 : vector<1x256xf32>
    %120 = arith.divf %118, %119 : vector<1x256xf32>
    %121 = vector.broadcast %120 : vector<1x256xf32> to vector<4x256xf32>
    %122 = arith.mulf %121, %1 : vector<4x256xf32>
    %c0_48 = arith.constant 0 : index
    %c0_49 = arith.constant 0 : index
    %c0_50 = arith.constant 0 : index
    %123 = vector.load %arg8[%c0_48, %c0_49, %c0_50] : memref<1x4x256xf32, #tpu.memory_space<vmem>>, vector<1x4x256xf32>
    %124 = vector.shape_cast %123 : vector<1x4x256xf32> to vector<4x256xf32>
    %125 = vector.shape_cast %122 : vector<4x256xf32> to vector<1x4x256xf32>
    tpu.vector_store %arg8[%c0_48, %c0_49, %c0_50], %125 {strides = array<i32>} : memref<1x4x256xf32, #tpu.memory_space<vmem>>, vector<1x4x256xf32>,
    return
  }
  func.func @transform_0(%arg0: i32) -> (i32, i32, i32) {
    %c0_i32 = arith.constant 0 : i32
    %c0_i32_0 = arith.constant 0 : i32
    %c0_i32_1 = arith.constant 0 : i32
    return %arg0, %c0_i32, %c0_i32_0 : i32, i32, i32
  }
  func.func @transform_1(%arg0: i32) -> (i32, i32, i32) {
    %c0_i32 = arith.constant 0 : i32
    %c0_i32_0 = arith.constant 0 : i32
    %c0_i32_1 = arith.constant 0 : i32
    %c0_i32_2 = arith.constant 0 : i32
    return %c0_i32, %c0_i32_0, %c0_i32_1 : i32, i32, i32
  }
  func.func @transform_2(%arg0: i32) -> (i32, i32) {
    %c0_i32 = arith.constant 0 : i32
    %c0_i32_0 = arith.constant 0 : i32
    %c0_i32_1 = arith.constant 0 : i32
    return %c0_i32, %c0_i32_0 : i32, i32
  }
  func.func @transform_3(%arg0: i32) -> i32 {
    %c0_i32 = arith.constant 0 : i32
    %c0_i32_0 = arith.constant 0 : i32
    return %c0_i32 : i32
  }
  func.func @transform_4(%arg0: i32) -> i32 {
    %c0_i32 = arith.constant 0 : i32
    %c0_i32_0 = arith.constant 0 : i32
    return %c0_i32 : i32
  }
  func.func @transform_5(%arg0: i32) -> i32 {
    %c0_i32 = arith.constant 0 : i32
    %c0_i32_0 = arith.constant 0 : i32
    return %c0_i32 : i32
  }
  func.func @transform_6(%arg0: i32) -> i32 {
    %c0_i32 = arith.constant 0 : i32
    %c0_i32_0 = arith.constant 0 : i32
    return %c0_i32 : i32
  }
  func.func @transform_7(%arg0: i32) -> (i32, i32, i32) {
    %c0_i32 = arith.constant 0 : i32
    %c0_i32_0 = arith.constant 0 : i32
    %c0_i32_1 = arith.constant 0 : i32
    return %arg0, %c0_i32, %c0_i32_0 : i32, i32, i32
  }
}

</mosaic_0001>

<llo_original>
// kernel: tpu_custom_call.1
$region0: #{tpu_custom_call.1}
  #allocation0 [shape = 'u32[]', space=smem, size = 0x4, offset = 0x4, fixed_abs, tag = 'smem constant byte address 0x4 - core index']
  #allocation1 [shape = 'u32[144,128]{1,0:T(1,128)}', space=vmem, size = 0x12000, scoped, tag = 'internal scratch']
  #allocation2 [shape = 'f32[1]{0:T(128)S(6)}', space=smem, size = 0x200, scoped, tag = 'scoped memory for tpu_custom_call.1']
  #allocation3 [shape = 'f32[1]{0:T(128)S(6)}', space=smem, size = 0x200, scoped, tag = 'scoped memory for tpu_custom_call.1']
  %s0 = inlined_call_operand.vmem [shape: f32[2,4,256], index: 0, kind: input, shape index: {}]
  %s1 = inlined_call_operand.vmem [shape: f32[7,14,1], index: 1, kind: input, shape index: {}]
  %s2 = inlined_call_operand.vmem [shape: f32[14,256], index: 2, kind: input, shape index: {}]
  %s3 = inlined_call_operand.vmem [shape: f32[2], index: 3, kind: input, shape index: {}]
  %s4 = inlined_call_operand.vmem [shape: f32[2], index: 4, kind: input, shape index: {}]
  %s5 = inlined_call_operand.<no memory space> [shape: f32[1], index: 5, kind: input, shape index: {}]
  %s6 = inlined_call_operand.<no memory space> [shape: f32[1], index: 6, kind: input, shape index: {}]
  %s7 = inlined_call_operand.hbm [shape: f32[2,4,256], index: 7, kind: output, shape index: {}]
  %s8 = sld [smem:[#allocation0]]
  $region69: #{tpu_custom_call.1} parent=0
    _
  %s10 = ssub.s32 1, %s8
  %s11 = scalar_select 0, %s10, %s8
  %12 = sst [smem:[#allocation2]] %s5
  %13 = sst [smem:[#allocation3]] %s6
  $region1: #{tpu_custom_call.1} parent=0
    #allocation4 [shape = 'u8[512]{0}', space=smem, size = 0x200, scoped, tag = 'input window, operand 3, single buffered']
    #allocation5 [shape = 's32[2]{0}', space=sflag, size = 0x8, scoped, tag = 'scoped memory for tpu_custom_call.1']
    #allocation6 [shape = 's32[2]{0}', space=sflag, size = 0x8, scoped, tag = 'scoped memory for tpu_custom_call.1']
    #allocation7 [shape = 'u8[512]{0}', space=smem, size = 0x200, scoped, tag = 'input window, operand 4, single buffered']
    #allocation8 [shape = 's32[1]{0}', space=sflag, size = 0x4, scoped, tag = 'scoped memory for tpu_custom_call.1']
    #allocation9 [shape = 'u8[8192]{0}', space=vmem, size = 0x2000, scoped, tag = 'output window, operand 0']
    %14 = vsyncpa [#allocation6], 0
    %15 = vsyncpa [#allocation8], 0
    %16 = vsyncpa [#allocation5], 0
    %s17 = scalar_lea.sflag [#allocation5], 1
    %18 = vsyncpa %s17, 0
    loop: start=0, step=1, limit=4
    $region2: #{tpu_custom_call.1} parent=1 // loop_pre_header
      _
    $region3: #{tpu_custom_call.1} parent=1 // loop_header
      %s20 = sphi 0, %s24
      %p21 = scmp.ge.s32.totalorder %s20, 4
      %s30 = sphi 0, %s32
      %s33 = sphi 0, %s30
      %s34 = sphi 0, %s33
      %s50 = sphi 0, %s34
      %s54 = sphi 0, %s54
      %s56 = sphi 0, %s54
      %s57 = sphi 0, %s56
      %s71 = sphi 0, %s57
      %s75 = sphi 0, %s75
      %s77 = sphi 0, %s75
      %s78 = sphi 0, %s77
      %s92 = sphi 0, %s78
      %s96 = sphi 0, %s96
      %s98 = sphi 0, %s96
      %s99 = sphi 0, %s98
      %s113 = sphi 0, %s99
      %s117 = sphi 0, %s117
      %s119 = sphi 0, %s117
      %s120 = sphi 0, %s119
      %s134 = sphi 0, %s120
      %s138 = sphi 0, %s138
      %s140 = sphi 0, %s138
      %s141 = sphi 0, %s140
      %s155 = sphi 0, %s141
      %s159 = sphi 0, %s159
      %s161 = sphi 0, %s159
      %s162 = sphi 0, %s161
      %s176 = sphi 0, %s162
      %s182 = sphi 0, %s184
      %s185 = sphi 0, %s182
      %s186 = sphi 0, %s185
      %s202 = sphi 0, %s186
    $region4: #{tpu_custom_call.1} parent=1 // loop_header_branch
      %23 = sbr.rel (%p21) target = $region8
    $region5: #{tpu_custom_call.1} parent=1 // loop_body
      %s25 = ssub.s32 %s20, 1
      %s26 = ssub.s32 %s20, 2
      %s27 = sadd.s32 %s20, 1
      %s28 = ssub.s32 %s20, %s27
      %p29 = scmp.eq.s32.totalorder %s28, 0
      %s31 = sadd.s32 %s30, 1
      %s32 = scalar_select %p29, %s30, %s31
      %p35 = pneg %p29
      %p36 = scmp.eq.s32.totalorder %s20, 1
      %p37 = por %p35, %p36
      %p38 = scmp.ne.s32.totalorder %s30, %s33
      %p39 = scmp.eq.s32.totalorder %s20, 0
      %p40 = por %p38, %p39
      %p41 = scmp.ne.s32.totalorder %s30, %s33
      %p42 = scmp.eq.s32.totalorder %s25, 1
      %p43 = por %p41, %p42
      %p44 = scmp.ne.s32.totalorder %s33, %s34
      %p45 = scmp.eq.s32.totalorder %s25, 0
      %p46 = por %p44, %p45
      %p47 = scmp.ne.s32.totalorder %s33, %s34
      %p48 = scmp.eq.s32.totalorder %s26, 1
      %p49 = por %p47, %p48
      %p51 = scmp.ne.s32.totalorder %s34, %s50
      %p52 = scmp.eq.s32.totalorder %s26, 0
      %p53 = por %p51, %p52
      %s55 = sadd.s32 %s54, 1
      %p58 = scmp.eq.s32.totalorder %s20, 1
      %p59 = scmp.ne.s32.totalorder %s54, %s56
      %p60 = scmp.eq.s32.totalorder %s20, 0
      %p61 = por %p59, %p60
      %p62 = scmp.ne.s32.totalorder %s54, %s56
      %p63 = scmp.eq.s32.totalorder %s25, 1
      %p64 = por %p62, %p63
      %p65 = scmp.ne.s32.totalorder %s56, %s57
      %p66 = scmp.eq.s32.totalorder %s25, 0
      %p67 = por %p65, %p66
      %p68 = scmp.ne.s32.totalorder %s56, %s57
      %p69 = scmp.eq.s32.totalorder %s26, 1
      %p70 = por %p68, %p69
      %p72 = scmp.ne.s32.totalorder %s57, %s71
      %p73 = scmp.eq.s32.totalorder %s26, 0
      %p74 = por %p72, %p73
      %s76 = sadd.s32 %s75, 1
      %p79 = scmp.eq.s32.totalorder %s20, 1
      %p80 = scmp.ne.s32.totalorder %s75, %s77
      %p81 = scmp.eq.s32.totalorder %s20, 0
      %p82 = por %p80, %p81
      %p83 = scmp.ne.s32.totalorder %s75, %s77
      %p84 = scmp.eq.s32.totalorder %s25, 1
      %p85 = por %p83, %p84
      %p86 = scmp.ne.s32.totalorder %s77, %s78
      %p87 = scmp.eq.s32.totalorder %s25, 0
      %p88 = por %p86, %p87
      %p89 = scmp.ne.s32.totalorder %s77, %s78
      %p90 = scmp.eq.s32.totalorder %s26, 1
      %p91 = por %p89, %p90
      %p93 = scmp.ne.s32.totalorder %s78, %s92
      %p94 = scmp.eq.s32.totalorder %s26, 0
      %p95 = por %p93, %p94
      %s97 = sadd.s32 %s96, 1
      %p100 = scmp.eq.s32.totalorder %s20, 1
      %p101 = scmp.ne.s32.totalorder %s96, %s98
      %p102 = scmp.eq.s32.totalorder %s20, 0
      %p103 = por %p101, %p102
      %p104 = scmp.ne.s32.totalorder %s96, %s98
      %p105 = scmp.eq.s32.totalorder %s25, 1
      %p106 = por %p104, %p105
      %p107 = scmp.ne.s32.totalorder %s98, %s99
      %p108 = scmp.eq.s32.totalorder %s25, 0
      %p109 = por %p107, %p108
      %p110 = scmp.ne.s32.totalorder %s98, %s99
      %p111 = scmp.eq.s32.totalorder %s26, 1
      %p112 = por %p110, %p111
      %p114 = scmp.ne.s32.totalorder %s99, %s113
      %p115 = scmp.eq.s32.totalorder %s26, 0
      %p116 = por %p114, %p115
      %s118 = sadd.s32 %s117, 1
      %p121 = scmp.eq.s32.totalorder %s20, 1
      %p122 = scmp.ne.s32.totalorder %s117, %s119
      %p123 = scmp.eq.s32.totalorder %s20, 0
      %p124 = por %p122, %p123
      %p125 = scmp.ne.s32.totalorder %s117, %s119
      %p126 = scmp.eq.s32.totalorder %s25, 1
      %p127 = por %p125, %p126
      %p128 = scmp.ne.s32.totalorder %s119, %s120
      %p129 = scmp.eq.s32.totalorder %s25, 0
      %p130 = por %p128, %p129
      %p131 = scmp.ne.s32.totalorder %s119, %s120
      %p132 = scmp.eq.s32.totalorder %s26, 1
      %p133 = por %p131, %p132
      %p135 = scmp.ne.s32.totalorder %s120, %s134
      %p136 = scmp.eq.s32.totalorder %s26, 0
      %p137 = por %p135, %p136
      %s139 = sadd.s32 %s138, 1
      %p142 = scmp.eq.s32.totalorder %s20, 1
      %p143 = scmp.ne.s32.totalorder %s138, %s140
      %p144 = scmp.eq.s32.totalorder %s20, 0
      %p145 = por %p143, %p144
      %p146 = scmp.ne.s32.totalorder %s138, %s140
      %p147 = scmp.eq.s32.totalorder %s25, 1
      %p148 = por %p146, %p147
      %p149 = scmp.ne.s32.totalorder %s140, %s141
      %p150 = scmp.eq.s32.totalorder %s25, 0
      %p151 = por %p149, %p150
      %p152 = scmp.ne.s32.totalorder %s140, %s141
      %p153 = scmp.eq.s32.totalorder %s26, 1
      %p154 = por %p152, %p153
      %p156 = scmp.ne.s32.totalorder %s141, %s155
      %p157 = scmp.eq.s32.totalorder %s26, 0
      %p158 = por %p156, %p157
      %s160 = sadd.s32 %s159, 1
      %p163 = scmp.eq.s32.totalorder %s20, 1
      %p164 = scmp.ne.s32.totalorder %s159, %s161
      %p165 = scmp.eq.s32.totalorder %s20, 0
      %p166 = por %p164, %p165
      %p167 = scmp.ne.s32.totalorder %s159, %s161
      %p168 = scmp.eq.s32.totalorder %s25, 1
      %p169 = por %p167, %p168
      %p170 = scmp.ne.s32.totalorder %s161, %s162
      %p171 = scmp.eq.s32.totalorder %s25, 0
      %p172 = por %p170, %p171
      %p173 = scmp.ne.s32.totalorder %s161, %s162
      %p174 = scmp.eq.s32.totalorder %s26, 1
      %p175 = por %p173, %p174
      %p177 = scmp.ne.s32.totalorder %s162, %s176
      %p178 = scmp.eq.s32.totalorder %s26, 0
      %p179 = por %p177, %p178
      %s180 = ssub.s32 %s20, %s27
      %p181 = scmp.eq.s32.totalorder %s180, 0
      %s183 = sadd.s32 %s182, 1
      %s184 = scalar_select %p181, %s182, %s183
      %p187 = pneg %p181
      %p188 = scmp.eq.s32.totalorder %s20, 1
      %p189 = por %p187, %p188
      %p190 = scmp.ne.s32.totalorder %s182, %s185
      %p191 = scmp.eq.s32.totalorder %s20, 0
      %p192 = por %p190, %p191
      %p193 = scmp.ne.s32.totalorder %s182, %s185
      %p194 = scmp.eq.s32.totalorder %s25, 1
      %p195 = por %p193, %p194
      %p196 = scmp.ne.s32.totalorder %s185, %s186
      %p197 = scmp.eq.s32.totalorder %s25, 0
      %p198 = por %p196, %p197
      %p199 = scmp.ne.s32.totalorder %s185, %s186
      %p200 = scmp.eq.s32.totalorder %s26, 1
      %p201 = por %p199, %p200
      %p203 = scmp.ne.s32.totalorder %s186, %s202
      %p204 = scmp.eq.s32.totalorder %s26, 0
      %p205 = por %p203, %p204
      %p206 = scmp.le.s32.totalorder 1, %s20
      %p207 = scmp.lt.s32.totalorder %s20, 3
      %p208 = pnand %p206, %p207
      %p209 = pneg %p208
      // Predicated region
      $region9: #{tpu_custom_call.1} parent=5 // pred_check
        _
      $region10: #{tpu_custom_call.1} parent=5 // pred_check_branch
        %211 = sbr.rel (%p208) target = $region12
      $region11: #{tpu_custom_call.1} parent=5 // pred_region
        %s212 = ssub.s32 %s20, 1
        // Predicated region
        $region13: #{tpu_custom_call.1} parent=11 // pred_check
          %p213 = pneg %p67
        $region14: #{tpu_custom_call.1} parent=11 // pred_check_branch
          %215 = sbr.rel (%p213) target = $region16
        $region15: #{tpu_custom_call.1} parent=11 // pred_region
          _
        $region16: #{tpu_custom_call.1} parent=11 // pred_fallthru
          _
        // Predicated region
        $region17: #{tpu_custom_call.1} parent=11 // pred_check
          %p216 = pneg %p88
        $region18: #{tpu_custom_call.1} parent=11 // pred_check_branch
          %218 = sbr.rel (%p216) target = $region20
        $region19: #{tpu_custom_call.1} parent=11 // pred_region
          _
        $region20: #{tpu_custom_call.1} parent=11 // pred_fallthru
          _
        // Predicated region
        $region21: #{tpu_custom_call.1} parent=11 // pred_check
          %p219 = pneg %p109
        $region22: #{tpu_custom_call.1} parent=11 // pred_check_branch
          %221 = sbr.rel (%p219) target = $region24
        $region23: #{tpu_custom_call.1} parent=11 // pred_region
          %s223 = ssub.s32 16, 16
          %224 = vsyncadd [#allocation6], %s223
          %s226 = sshll.u32 %s3, 4
          %s227 = int_to_ptr.vmem [resolvable:$true] %s226
          %229 = dma.vmem_to_smem %s227, 16, [#allocation4], [#allocation6]
        $region24: #{tpu_custom_call.1} parent=11 // pred_fallthru
          _
        // Predicated region
        $region25: #{tpu_custom_call.1} parent=11 // pred_check
          %p230 = pneg %p130
        $region26: #{tpu_custom_call.1} parent=11 // pred_check_branch
          %232 = sbr.rel (%p230) target = $region28
        $region27: #{tpu_custom_call.1} parent=11 // pred_region
          %s234 = ssub.s32 16, 16
          %235 = vsyncadd [#allocation8], %s234
          %s237 = sshll.u32 %s4, 4
          %s238 = int_to_ptr.vmem [resolvable:$true] %s237
          %240 = dma.vmem_to_smem %s238, 16, [#allocation7], [#allocation8]
        $region28: #{tpu_custom_call.1} parent=11 // pred_fallthru
          _
        // Predicated region
        $region29: #{tpu_custom_call.1} parent=11 // pred_check
          %p241 = pneg %p151
        $region30: #{tpu_custom_call.1} parent=11 // pred_check_branch
          %243 = sbr.rel (%p241) target = $region32
        $region31: #{tpu_custom_call.1} parent=11 // pred_region
          _
        $region32: #{tpu_custom_call.1} parent=11 // pred_fallthru
          _
        // Predicated region
        $region33: #{tpu_custom_call.1} parent=11 // pred_check
          %p244 = pneg %p172
        $region34: #{tpu_custom_call.1} parent=11 // pred_check_branch
          %246 = sbr.rel (%p244) target = $region36
        $region35: #{tpu_custom_call.1} parent=11 // pred_region
          _
        $region36: #{tpu_custom_call.1} parent=11 // pred_fallthru
          _
      $region12: #{tpu_custom_call.1} parent=5 // pred_fallthru
        _
      %p247 = scmp.lt.s32.totalorder %s20, 2
      // Predicated region
      $region37: #{tpu_custom_call.1} parent=5 // pred_check
        %p248 = pneg %p247
      $region38: #{tpu_custom_call.1} parent=5 // pred_check_branch
        %250 = sbr.rel (%p248) target = $region40
      $region39: #{tpu_custom_call.1} parent=5 // pred_region
        // Predicated region
        $region41: #{tpu_custom_call.1} parent=39 // pred_check
          %p251 = pneg %p40
        $region42: #{tpu_custom_call.1} parent=39 // pred_check_branch
          %253 = sbr.rel (%p251) target = $region44
        $region43: #{tpu_custom_call.1} parent=39 // pred_region
          %p254 = scmp.lt.s32.totalorder %s20, 1
          %s255 = scalar_select %p254, %s20, 1
          %s256 = smul.addr %s255, 2
          %s257 = smul.addr %s256, 4
          %s258 = scalar_lea.vmem %s0, %s257
        $region44: #{tpu_custom_call.1} parent=39 // pred_fallthru
          _
      $region40: #{tpu_custom_call.1} parent=5 // pred_fallthru
        _
      %p259 = scmp.le.s32.totalorder 1, %s20
      %p260 = scmp.lt.s32.totalorder %s20, 3
      %p261 = pnand %p259, %p260
      %p262 = pneg %p261
      // Predicated region
      $region45: #{tpu_custom_call.1} parent=5 // pred_check
        _
      $region46: #{tpu_custom_call.1} parent=5 // pred_check_branch
        %264 = sbr.rel (%p261) target = $region48
      $region47: #{tpu_custom_call.1} parent=5 // pred_region
        %s265 = ssub.s32 %s20, 1
        // Predicated region
        $region49: #{tpu_custom_call.1} parent=47 // pred_check
          %p266 = pneg %p109
        $region50: #{tpu_custom_call.1} parent=47 // pred_check_branch
          %268 = sbr.rel (%p266) target = $region52
        $region51: #{tpu_custom_call.1} parent=47 // pred_region
          %269 = dma.done [#allocation6], 16
        $region52: #{tpu_custom_call.1} parent=47 // pred_fallthru
          _
        // Predicated region
        $region53: #{tpu_custom_call.1} parent=47 // pred_check
          %p270 = pneg %p130
        $region54: #{tpu_custom_call.1} parent=47 // pred_check_branch
          %272 = sbr.rel (%p270) target = $region56
        $region55: #{tpu_custom_call.1} parent=47 // pred_region
          %273 = dma.done [#allocation8], 16
        $region56: #{tpu_custom_call.1} parent=47 // pred_fallthru
          _
        %274 = sfence
        %p275 = scmp.lt.s32.totalorder %s25, 1
        %s276 = scalar_select %p275, %s25, 1
        %s277 = smul.addr %s276, 2
        %s278 = smul.addr %s277, 4
        %s279 = scalar_lea.vmem %s0, %s278
        %p280 = pneg %p46
        %p281 = pneg %p43
        %p282 = pneg %p67
        %p283 = pneg %p64
        %p284 = pneg %p88
        %p285 = pneg %p85
        %p286 = pneg %p109
        %p287 = pneg %p106
        %p288 = pneg %p130
        %p289 = pneg %p127
        %p290 = pneg %p151
        %p291 = pneg %p148
        %p292 = pneg %p172
        %p293 = pneg %p169
        %p294 = pneg %p198
        %p295 = pneg %p195
        %s296 = sand.u32 %s185, 1
        %s297 = scalar_lea.sflag [#allocation5], %s296
        %s298 = sand.u32 %s185, 1
        %s299 = smul.addr %s298, 8
        %s300 = scalar_lea.vmem [#allocation9], %s299
        %p301 = scmp.lt.s32.totalorder %s25, 1
        %s302 = scalar_select %p301, %s25, 1
        %s303 = smul.addr %s302, 2
        %s304 = smul.addr %s303, 4
        %s305 = scalar_lea.vmem %s0, %s304
        %v306 = vld [vmem:[%s305] sm:$0xff]
        %v308 = vcombine.high %v306, %v306
        %vm310 = vcmask 1043456
        %v311 = vsel %vm310, %v306, 0.0
        %v312 = vrot.slane %v311, 4
        %v313 = vadd.f32 %v311, %v312
        %v314 = vrot.slane %v313, 2
        %v315 = vadd.f32 %v313, %v314
        %v316 = vrot.slane %v315, 1
        %v317 = vadd.f32 %v315, %v316
        %v318 = vsel %vm310, %v308, 0.0
        %v319 = vrot.slane %v318, 4
        %v320 = vadd.f32 %v318, %v319
        %v321 = vrot.slane %v320, 2
        %v322 = vadd.f32 %v320, %v321
        %v323 = vrot.slane %v322, 1
        %v324 = vadd.f32 %v322, %v323
        %v325 = vrcp.pop 4.0
        %v326 = vmul.f32 %v317, %v325
        %v327 = vmul.f32 %v324, %v325
        %v328 = vsel %vm310, %v306, -inf
        %v329 = vrot.slane %v328, 4
        %v330 = vmax.f32 %v328, %v329
        %v331 = vrot.slane %v330, 2
        %v332 = vmax.f32 %v330, %v331
        %v333 = vrot.slane %v332, 1
        %v334 = vmax.f32 %v332, %v333
        %v335 = vsel %vm310, %v308, -inf
        %v336 = vrot.slane %v335, 4
        %v337 = vmax.f32 %v335, %v336
        %v338 = vrot.slane %v337, 2
        %v339 = vmax.f32 %v337, %v338
        %v340 = vrot.slane %v339, 1
        %v341 = vmax.f32 %v339, %v340
        %s342 = sld [smem:[#allocation4]]
        %v343 = vstv %s342
        %v344 = vmul.f32 %v326, %v343
        %v345 = vmul.f32 %v327, %v343
        %s346 = sld [smem:[#allocation7]]
        %v347 = vstv %s346
        %v348 = vadd.f32 %v344, %v347
        %v349 = vadd.f32 %v345, %v347
        %s350 = sld [smem:[#allocation4 + $0x1]]
        %v351 = vstv %s350
        %v352 = vmul.f32 %v334, %v351
        %v353 = vmul.f32 %v341, %v351
        %s354 = sld [smem:[#allocation7 + $0x1]]
        %v355 = vstv %s354
        %v356 = vadd.f32 %v352, %v355
        %v357 = vadd.f32 %v353, %v355
        %vm358 = vcmask 1040384
        %v359 = vsel %vm358, %v348, %v356
        %v360 = vsel %vm358, %v349, %v357
        %363 = vrot.lane.b32.xlu0 %v359, 3
        %v364 = vpop.permute.xlu0 %363
        %365 = vrot.lane.b32.xlu0 %v360, 3
        %v366 = vpop.permute.xlu0 %365
        %vm367 = vcmask 23552
        %v368 = vsel %vm367, %v364, %v366
        %v371 = vsel %vm367, 0.0, %v364
        %372 = vrot.lane.b32.xlu0 %v359, 2
        %v373 = vpop.permute.xlu0 %372
        %374 = vrot.lane.b32.xlu0 %v360, 2
        %v375 = vpop.permute.xlu0 %374
        %vm376 = vcmask 15360
        %v377 = vsel %vm376, %v373, %v375
        %v379 = vsel %vm376, 0.0, %v373
        %380 = vrot.lane.b32.xlu0 %v359, 1
        %v381 = vpop.permute.xlu0 %380
        %382 = vrot.lane.b32.xlu0 %v360, 1
        %v383 = vpop.permute.xlu0 %382
        %vm384 = vcmask 7168
        %v385 = vsel %vm384, %v381, %v383
        %v387 = vsel %vm384, 0.0, %v381
        %388 = vrot.lane.b32.xlu0 %v359, 127
        %v389 = vpop.permute.xlu0 %388
        %390 = vrot.lane.b32.xlu0 %v360, 127
        %v391 = vpop.permute.xlu0 %390
        %vm392 = vcmask 1039360
        %v393 = vsel %vm392, %v389, %v391
        %v396 = vsel %vm392, %v391, 0.0
        %397 = vrot.lane.b32.xlu0 %v359, 126
        %v398 = vpop.permute.xlu0 %397
        %399 = vrot.lane.b32.xlu0 %v360, 126
        %v400 = vpop.permute.xlu0 %399
        %vm401 = vcmask 1031168
        %v402 = vsel %vm401, %v398, %v400
        %v404 = vsel %vm401, %v400, 0.0
        %405 = vrot.lane.b32.xlu0 %v359, 125
        %v406 = vpop.permute.xlu0 %405
        %407 = vrot.lane.b32.xlu0 %v360, 125
        %v408 = vpop.permute.xlu0 %407
        %vm409 = vcmask 1022976
        %v410 = vsel %vm409, %v406, %v408
        %v412 = vsel %vm409, %v408, 0.0
        %v414 = vrot.slane %v379, 6
        %v415 = vrot.slane %v377, 6
        %v419 = vrot.slane %v387, 4
        %v420 = vrot.slane %v385, 4
        %v423 = vrot.slane %v359, 2
        %v424 = vrot.slane %v360, 2
        %v428 = vrot.slane %v402, 6
        %v429 = vrot.slane %v404, 6
        %v433 = vrot.slane %v410, 4
        %v434 = vrot.slane %v412, 4
        %vm437 = vcmask 1041408
        %v438 = vsel %vm437, %v371, %v414
        %v439 = vsel %vm437, %v368, %v415
        %v440 = vsel %vm310, %v438, %v419
        %v441 = vsel %vm310, %v439, %v420
        %vm442 = vcmask 1045504
        %v443 = vsel %vm442, %v440, %v423
        %v444 = vsel %vm442, %v441, %v424
        %v445 = vsel %vm437, %v393, %v428
        %v446 = vsel %vm437, %v396, %v429
        %v447 = vsel %vm310, %v445, %v433
        %v448 = vsel %vm310, %v446, %v434
        %v449 = vld [vmem:[%s2] sm:$0xff]
        %v450 = vld [vmem:[%s2 + $0x8] sm:$0xff]
        %v451 = vld [vmem:[%s2 + $0x10] sm:$0x3f]
        %v452 = vld [vmem:[%s2 + $0x18] sm:$0x3f]
        %v453 = vmul.f32 %v443, %v449
        %v454 = vmul.f32 %v444, %v450
        %v455 = vmul.f32 %v447, %v451
        %v456 = vmul.f32 %v448, %v452
        %v457 = vld [vmem:[%s1] sm:$0xff]
        %v458 = vld [vmem:[%s1 + $0x8] sm:$0x3f]
        %460 = vset.pattern.permute.xlu0 0
        %461 = vperm.xlu0 %460, %v457
        %v462 = vpop.permute.xlu0 %461
        %465 = vset.pattern.permute.xlu0 0
        %466 = vperm.xlu0 %465, %v458
        %v467 = vpop.permute.xlu0 %466
        %v469 = vmul.f32 %v453, %v462
        %v470 = vmul.f32 %v454, %v462
        %v471 = vmul.f32 %v455, %v467
        %v472 = vmul.f32 %v456, %v467
        %v473 = vsel %vm442, %v471, 0.0
        %v474 = vadd.f32 %v469, %v473
        %v475 = vrot.slane %v474, 4
        %v476 = vadd.f32 %v474, %v475
        %v477 = vrot.slane %v476, 2
        %v478 = vadd.f32 %v476, %v477
        %v479 = vrot.slane %v478, 1
        %v480 = vadd.f32 %v478, %v479
        %v481 = vsel %vm442, %v472, 0.0
        %v482 = vadd.f32 %v470, %v481
        %v483 = vrot.slane %v482, 4
        %v484 = vadd.f32 %v482, %v483
        %v485 = vrot.slane %v484, 2
        %v486 = vadd.f32 %v484, %v485
        %v487 = vrot.slane %v486, 1
        %v488 = vadd.f32 %v486, %v487
        %491 = vrot.lane.b32.xlu0 %v480, 48
        %v492 = vpop.permute.xlu0 %491
        %493 = vrot.lane.b32.xlu0 %v488, 48
        %v494 = vpop.permute.xlu0 %493
        %vm495 = vcmask 392192
        %v496 = vsel %vm495, %v492, %v494
        %v499 = vsel %vm495, 0.0, %v492
        %v500 = vadd.f32 %v499, 0.0
        %v501 = vadd.f32 %v496, 0.0
        %s502 = scalar_lea.vmem %s1, 16
        %v503 = vld [vmem:[%s502] sm:$0xff]
        %v504 = vld [vmem:[%s502 + $0x8] sm:$0x3f]
        %506 = vset.pattern.permute.xlu0 0
        %507 = vperm.xlu0 %506, %v503
        %v508 = vpop.permute.xlu0 %507
        %511 = vset.pattern.permute.xlu0 0
        %512 = vperm.xlu0 %511, %v504
        %v513 = vpop.permute.xlu0 %512
        %v515 = vmul.f32 %v453, %v508
        %v516 = vmul.f32 %v454, %v508
        %v517 = vmul.f32 %v455, %v513
        %v518 = vmul.f32 %v456, %v513
        %v519 = vsel %vm442, %v517, 0.0
        %v520 = vadd.f32 %v515, %v519
        %v521 = vrot.slane %v520, 4
        %v522 = vadd.f32 %v520, %v521
        %v523 = vrot.slane %v522, 2
        %v524 = vadd.f32 %v522, %v523
        %v525 = vrot.slane %v524, 1
        %v526 = vadd.f32 %v524, %v525
        %v527 = vsel %vm442, %v518, 0.0
        %v528 = vadd.f32 %v516, %v527
        %v529 = vrot.slane %v528, 4
        %v530 = vadd.f32 %v528, %v529
        %v531 = vrot.slane %v530, 2
        %v532 = vadd.f32 %v530, %v531
        %v533 = vrot.slane %v532, 1
        %v534 = vadd.f32 %v532, %v533
        %537 = vrot.lane.b32.xlu0 %v526, 32
        %v538 = vpop.permute.xlu0 %537
        %539 = vrot.lane.b32.xlu0 %v534, 32
        %v540 = vpop.permute.xlu0 %539
        %vm541 = vcmask 261120
        %v542 = vsel %vm541, %v538, %v540
        %v545 = vsel %vm541, 0.0, %v538
        %v546 = vadd.f32 %v500, %v545
        %v547 = vadd.f32 %v501, %v542
        %s548 = scalar_lea.vmem %s1, 32
        %v549 = vld [vmem:[%s548] sm:$0xff]
        %v550 = vld [vmem:[%s548 + $0x8] sm:$0x3f]
        %552 = vset.pattern.permute.xlu0 0
        %553 = vperm.xlu0 %552, %v549
        %v554 = vpop.permute.xlu0 %553
        %557 = vset.pattern.permute.xlu0 0
        %558 = vperm.xlu0 %557, %v550
        %v559 = vpop.permute.xlu0 %558
        %v561 = vmul.f32 %v453, %v554
        %v562 = vmul.f32 %v454, %v554
        %v563 = vmul.f32 %v455, %v559
        %v564 = vmul.f32 %v456, %v559
        %v565 = vsel %vm442, %v563, 0.0
        %v566 = vadd.f32 %v561, %v565
        %v567 = vrot.slane %v566, 4
        %v568 = vadd.f32 %v566, %v567
        %v569 = vrot.slane %v568, 2
        %v570 = vadd.f32 %v568, %v569
        %v571 = vrot.slane %v570, 1
        %v572 = vadd.f32 %v570, %v571
        %v573 = vsel %vm442, %v564, 0.0
        %v574 = vadd.f32 %v562, %v573
        %v575 = vrot.slane %v574, 4
        %v576 = vadd.f32 %v574, %v575
        %v577 = vrot.slane %v576, 2
        %v578 = vadd.f32 %v576, %v577
        %v579 = vrot.slane %v578, 1
        %v580 = vadd.f32 %v578, %v579
        %583 = vrot.lane.b32.xlu0 %v572, 16
        %v584 = vpop.permute.xlu0 %583
        %585 = vrot.lane.b32.xlu0 %v580, 16
        %v586 = vpop.permute.xlu0 %585
        %vm587 = vcmask 130048
        %v588 = vsel %vm587, %v584, %v586
        %v591 = vsel %vm587, 0.0, %v584
        %v592 = vadd.f32 %v546, %v591
        %v593 = vadd.f32 %v547, %v588
        %s594 = scalar_lea.vmem %s1, 48
        %v595 = vld [vmem:[%s594] sm:$0xff]
        %v596 = vld [vmem:[%s594 + $0x8] sm:$0x3f]
        %598 = vset.pattern.permute.xlu0 0
        %599 = vperm.xlu0 %598, %v595
        %v600 = vpop.permute.xlu0 %599
        %603 = vset.pattern.permute.xlu0 0
        %604 = vperm.xlu0 %603, %v596
        %v605 = vpop.permute.xlu0 %604
        %v607 = vmul.f32 %v453, %v600
        %v608 = vmul.f32 %v454, %v600
        %v609 = vmul.f32 %v455, %v605
        %v610 = vmul.f32 %v456, %v605
        %v611 = vsel %vm442, %v609, 0.0
        %v612 = vadd.f32 %v607, %v611
        %v613 = vrot.slane %v612, 4
        %v614 = vadd.f32 %v612, %v613
        %v615 = vrot.slane %v614, 2
        %v616 = vadd.f32 %v614, %v615
        %v617 = vrot.slane %v616, 1
        %v618 = vadd.f32 %v616, %v617
        %v619 = vsel %vm442, %v610, 0.0
        %v620 = vadd.f32 %v608, %v619
        %v621 = vrot.slane %v620, 4
        %v622 = vadd.f32 %v620, %v621
        %v623 = vrot.slane %v622, 2
        %v624 = vadd.f32 %v622, %v623
        %v625 = vrot.slane %v624, 1
        %v626 = vadd.f32 %v624, %v625
        %v627 = vadd.f32 %v592, %v618
        %v628 = vadd.f32 %v593, %v626
        %s629 = scalar_lea.vmem %s1, 64
        %v630 = vld [vmem:[%s629] sm:$0xff]
        %v631 = vld [vmem:[%s629 + $0x8] sm:$0x3f]
        %633 = vset.pattern.permute.xlu0 0
        %634 = vperm.xlu0 %633, %v630
        %v635 = vpop.permute.xlu0 %634
        %638 = vset.pattern.permute.xlu0 0
        %639 = vperm.xlu0 %638, %v631
        %v640 = vpop.permute.xlu0 %639
        %v642 = vmul.f32 %v453, %v635
        %v643 = vmul.f32 %v454, %v635
        %v644 = vmul.f32 %v455, %v640
        %v645 = vmul.f32 %v456, %v640
        %v646 = vsel %vm442, %v644, 0.0
        %v647 = vadd.f32 %v642, %v646
        %v648 = vrot.slane %v647, 4
        %v649 = vadd.f32 %v647, %v648
        %v650 = vrot.slane %v649, 2
        %v651 = vadd.f32 %v649, %v650
        %v652 = vrot.slane %v651, 1
        %v653 = vadd.f32 %v651, %v652
        %v654 = vsel %vm442, %v645, 0.0
        %v655 = vadd.f32 %v643, %v654
        %v656 = vrot.slane %v655, 4
        %v657 = vadd.f32 %v655, %v656
        %v658 = vrot.slane %v657, 2
        %v659 = vadd.f32 %v657, %v658
        %v660 = vrot.slane %v659, 1
        %v661 = vadd.f32 %v659, %v660
        %664 = vrot.lane.b32.xlu0 %v653, 112
        %v665 = vpop.permute.xlu0 %664
        %666 = vrot.lane.b32.xlu0 %v661, 112
        %v667 = vpop.permute.xlu0 %666
        %vm668 = vcmask 916480
        %v669 = vsel %vm668, %v665, %v667
        %v672 = vsel %vm668, %v667, 0.0
        %v673 = vadd.f32 %v627, %v669
        %v674 = vadd.f32 %v628, %v672
        %s675 = scalar_lea.vmem %s1, 80
        %v676 = vld [vmem:[%s675] sm:$0xff]
        %v677 = vld [vmem:[%s675 + $0x8] sm:$0x3f]
        %679 = vset.pattern.permute.xlu0 0
        %680 = vperm.xlu0 %679, %v676
        %v681 = vpop.permute.xlu0 %680
        %684 = vset.pattern.permute.xlu0 0
        %685 = vperm.xlu0 %684, %v677
        %v686 = vpop.permute.xlu0 %685
        %v688 = vmul.f32 %v453, %v681
        %v689 = vmul.f32 %v454, %v681
        %v690 = vmul.f32 %v455, %v686
        %v691 = vmul.f32 %v456, %v686
        %v692 = vsel %vm442, %v690, 0.0
        %v693 = vadd.f32 %v688, %v692
        %v694 = vrot.slane %v693, 4
        %v695 = vadd.f32 %v693, %v694
        %v696 = vrot.slane %v695, 2
        %v697 = vadd.f32 %v695, %v696
        %v698 = vrot.slane %v697, 1
        %v699 = vadd.f32 %v697, %v698
        %v700 = vsel %vm442, %v691, 0.0
        %v701 = vadd.f32 %v689, %v700
        %v702 = vrot.slane %v701, 4
        %v703 = vadd.f32 %v701, %v702
        %v704 = vrot.slane %v703, 2
        %v705 = vadd.f32 %v703, %v704
        %v706 = vrot.slane %v705, 1
        %v707 = vadd.f32 %v705, %v706
        %710 = vrot.lane.b32.xlu0 %v699, 96
        %v711 = vpop.permute.xlu0 %710
        %712 = vrot.lane.b32.xlu0 %v707, 96
        %v713 = vpop.permute.xlu0 %712
        %vm714 = vcmask 785408
        %v715 = vsel %vm714, %v711, %v713
        %v718 = vsel %vm714, %v713, 0.0
        %v719 = vadd.f32 %v673, %v715
        %v720 = vadd.f32 %v674, %v718
        %s721 = scalar_lea.vmem %s1, 96
        %v722 = vld [vmem:[%s721] sm:$0xff]
        %v723 = vld [vmem:[%s721 + $0x8] sm:$0x3f]
        %725 = vset.pattern.permute.xlu0 0
        %726 = vperm.xlu0 %725, %v722
        %v727 = vpop.permute.xlu0 %726
        %730 = vset.pattern.permute.xlu0 0
        %731 = vperm.xlu0 %730, %v723
        %v732 = vpop.permute.xlu0 %731
        %v734 = vmul.f32 %v453, %v727
        %v735 = vmul.f32 %v454, %v727
        %v736 = vmul.f32 %v455, %v732
        %v737 = vmul.f32 %v456, %v732
        %v738 = vsel %vm442, %v736, 0.0
        %v739 = vadd.f32 %v734, %v738
        %v740 = vrot.slane %v739, 4
        %v741 = vadd.f32 %v739, %v740
        %v742 = vrot.slane %v741, 2
        %v743 = vadd.f32 %v741, %v742
        %v744 = vrot.slane %v743, 1
        %v745 = vadd.f32 %v743, %v744
        %v746 = vsel %vm442, %v737, 0.0
        %v747 = vadd.f32 %v735, %v746
        %v748 = vrot.slane %v747, 4
        %v749 = vadd.f32 %v747, %v748
        %v750 = vrot.slane %v749, 2
        %v751 = vadd.f32 %v749, %v750
        %v752 = vrot.slane %v751, 1
        %v753 = vadd.f32 %v751, %v752
        %756 = vrot.lane.b32.xlu0 %v745, 80
        %v757 = vpop.permute.xlu0 %756
        %758 = vrot.lane.b32.xlu0 %v753, 80
        %v759 = vpop.permute.xlu0 %758
        %vm760 = vcmask 654336
        %v761 = vsel %vm760, %v757, %v759
        %v764 = vsel %vm760, %v759, 0.0
        %v765 = vadd.f32 %v719, %v761
        %v766 = vadd.f32 %v720, %v764
        %s767 = sld [smem:[#allocation2]]
        %v768 = vstv %s767
        %v769 = vmul.f32 %v765, %v768
        %v770 = vmul.f32 %v766, %v768
        %s771 = sld [smem:[#allocation3]]
        %v772 = vstv %s771
        %v773 = vadd.f32 %v769, %v772
        %v774 = vadd.f32 %v770, %v772
        %v775 = vxor.u32 %v773, 2147483648
        %v776 = vxor.u32 %v774, 2147483648
        %v777 = vmul.f32 %v775, 1.442695
        %v778 = vpow.pop %v777
        %v779 = vmul.f32 %v776, 1.442695
        %v780 = vpow.pop %v779
        %v781 = vadd.f32 %v778, 1.0
        %v782 = vadd.f32 %v780, 1.0
        %v783 = vrcp.pop %v781
        %v784 = vmul.f32 1.0, %v783
        %v785 = vrcp.pop %v782
        %v786 = vmul.f32 1.0, %v785
        %v787 = vlaneseq
        %v788 = vshrl.u32 %v787, 7
        %v789 = vsub.s32 0, %v788
        %v790 = vrot.slane %v784, %v789
        %v791 = vlaneseq
        %v792 = vshrl.u32 %v791, 7
        %v793 = vsub.s32 0, %v792
        %v794 = vrot.slane %v786, %v793
        %v795 = vmul.f32 %v790, %v306
        %v796 = vmul.f32 %v794, %v308
        %v799 = vcombine.low %v795, %v796
        %801 = vst [vmem:[%s300] sm:$0xff] %v799
        %s802 = sand.u32 %s185, 1
        %s803 = scalar_lea.sflag [#allocation5], %s802
        %s804 = sand.u32 %s185, 1
        %s805 = smul.addr %s804, 8
        %s806 = scalar_lea.vmem [#allocation9], %s805
        // Predicated region
        $region57: #{tpu_custom_call.1} parent=47 // pred_check
          %p807 = pneg %p195
        $region58: #{tpu_custom_call.1} parent=47 // pred_check_branch
          %809 = sbr.rel (%p807) target = $region60
        $region59: #{tpu_custom_call.1} parent=47 // pred_region
          %s811 = ssub.s32 128, 128
          %812 = vsyncadd %s803, %s811
          %s813 = smul.addr %s25, 2
          %s814 = smul.addr %s813, 64
          %s815 = scalar_lea.hbm %s7, %s814
          %s817 = sshll.u32 %s806, 4
          %s818 = int_to_ptr.vmem [resolvable:$true] %s817
          %820 = dma.vmem_to_hbm [thread:$0]  %s818, 128, %s815, %s803
        $region60: #{tpu_custom_call.1} parent=47 // pred_fallthru
          _
      $region48: #{tpu_custom_call.1} parent=5 // pred_fallthru
        _
      %p821 = scmp.le.s32.totalorder 2, %s20
      // Predicated region
      $region61: #{tpu_custom_call.1} parent=5 // pred_check
        %p822 = pneg %p821
      $region62: #{tpu_custom_call.1} parent=5 // pred_check_branch
        %824 = sbr.rel (%p822) target = $region64
      $region63: #{tpu_custom_call.1} parent=5 // pred_region
        %s825 = ssub.s32 %s20, 2
        // Predicated region
        $region65: #{tpu_custom_call.1} parent=63 // pred_check
          %p826 = pneg %p201
        $region66: #{tpu_custom_call.1} parent=63 // pred_check_branch
          %828 = sbr.rel (%p826) target = $region68
        $region67: #{tpu_custom_call.1} parent=63 // pred_region
          %s829 = sand.u32 %s186, 1
          %s830 = scalar_lea.sflag [#allocation5], %s829
          %s831 = sand.u32 %s186, 1
          %s832 = smul.addr %s831, 8
          %s833 = scalar_lea.vmem [#allocation9], %s832
          %834 = dma.done %s830, 128
        $region68: #{tpu_custom_call.1} parent=63 // pred_fallthru
          _
      $region64: #{tpu_custom_call.1} parent=5 // pred_fallthru
        _
    $region6: #{tpu_custom_call.1} parent=1 // loop_footer
      %s24 = sadd.s32 1, %s20
    $region7: #{tpu_custom_call.1} parent=1 // loop_footer_branch
      %19 = sbr.rel target = $region3
    $region8: #{tpu_custom_call.1} parent=1 // loop_exit
      _
    %835 = vsyncpa [#allocation5], 1
    %s836 = scalar_lea.sflag [#allocation5], 1
    %837 = vsyncpa %s836, 1
    %838 = vsyncpa [#allocation6], 1
    %s839 = scalar_lea.sflag [#allocation6], 1
    %840 = vsyncpa %s839, 1
    %841 = vsyncpa [#allocation8], 1

</llo_original>
